<compile_context>
chip_gen: v5e
topology: v5e:2x2
jax: 0.10.0
libtpu: 0.0.40
codegen_flags: <defaults>
</compile_context>

<pallas_src>
import jax
import jax.numpy as jnp
from jax.experimental import pallas as pl
from jax.experimental.pallas import tpu as pltpu


def _dma_copy_kernel(x_hbm, o_hbm, sem):
    # Single direct HBM->HBM DMA of the whole (already reshaped) array.
    cp = pltpu.make_async_copy(x_hbm, o_hbm, sem)
    cp.start()
    cp.wait()


def pallas_reshape(x, shape, materialize=False):
    """Equivalent of torch.Tensor.view(-1, shape[0], shape[1]).

    materialize=False (default): metadata-only reshape (matches .view's
    aliasing semantics; zero bytes moved).
    materialize=True: produce a fresh buffer via a Pallas HBM->HBM DMA copy.
    """
    s0, s1 = int(shape[0]), int(shape[1])
    total = x.size
    assert total % (s0 * s1) == 0, "input size must be divisible by s0*s1"
    b = total // (s0 * s1)
    out_shape = (b, s0, s1)

    # Metadata-only reshape to the module's output shape (row-major bitcast).
    x_view = jnp.reshape(x, out_shape)

    if not materialize:
        return x_view

    itemsize = jnp.dtype(x.dtype).itemsize
    return pl.pallas_call(
        _dma_copy_kernel,
        out_shape=jax.ShapeDtypeStruct(out_shape, x.dtype),
        in_specs=[pl.BlockSpec(memory_space=pl.ANY)],
        out_specs=pl.BlockSpec(memory_space=pl.ANY),
        scratch_shapes=[pltpu.SemaphoreType.DMA],
        cost_estimate=pl.CostEstimate(
            flops=0,
            transcendentals=0,
            bytes_accessed=2 * total * itemsize,
        ),
    )(x_view)


if __name__ == "__main__":
    key = jax.random.PRNGKey(0)
    # Module target shape (s0, s1) — e.g. Reshape((16, 16))
    target_shape = (16, 16)
    # Input consistent with a conv feature map: NCHW = (2, 4, 16, 16)
    x = jax.random.normal(key, (2, 4, 16, 16), dtype=jnp.float32)

    # Reference: pure-JAX reshape (== torch .view for contiguous tensors)
    y_ref = jnp.reshape(x, (-1, target_shape[0], target_shape[1]))

    # Fast (view-semantics) path — default.
    y_view = pallas_reshape(x, target_shape)
    y_view = jax.block_until_ready(y_view)
    assert y_view.shape == (8, 16, 16), y_view.shape
    assert y_view.dtype == x.dtype
    assert bool(jnp.array_equal(y_view, y_ref)), "view path mismatch"

    # Materializing path — exercises the Pallas HBM->HBM DMA kernel.
    y_copy = pallas_reshape(x, target_shape, materialize=True)
    y_copy = jax.block_until_ready(y_copy)
    assert y_copy.shape == (8, 16, 16), y_copy.shape
    assert y_copy.dtype == x.dtype
    assert bool(jnp.array_equal(y_copy, y_ref)), "copy path mismatch"

    print("KERNEL_OK")
</pallas_src>

<mosaic_0001>
module attributes {stable_mosaic.version = 11 : i64} {
  func.func @_dma_copy_kernel(%arg0: memref<8x16x16xf32, #tpu.memory_space<any>>, %arg1: memref<8x16x16xf32, #tpu.memory_space<any>>, %arg2: memref<!tpu.dma_semaphore, #tpu.memory_space<semaphore_mem>>) attributes {dimension_semantics = [], scalar_prefetch = 0 : i64, scratch_operands = 1 : i64, tpu.core_type = #tpu.core_type<tc>} {
    tpu.enqueue_dma source(%arg0 : memref<8x16x16xf32, #tpu.memory_space<any>>) target(%arg1 : memref<8x16x16xf32, #tpu.memory_space<any>>) target_semaphore(%arg2 : memref<!tpu.dma_semaphore, #tpu.memory_space<semaphore_mem>>)
    tpu.wait_dma2 semaphore(%arg2 : memref<!tpu.dma_semaphore, #tpu.memory_space<semaphore_mem>>) src(%arg0 : memref<8x16x16xf32, #tpu.memory_space<any>>) dst(%arg1 : memref<8x16x16xf32, #tpu.memory_space<any>>)
    return
  }
}

</mosaic_0001>

<llo_original>
// kernel: tpu_custom_call.1
$region0: #{tpu_custom_call.1}
  #allocation0 [shape = 'u32[]', space=smem, size = 0x4, offset = 0x4, fixed_abs, tag = 'smem constant byte address 0x4 - core index']
  #allocation1 [shape = 'u32[72,128]{1,0:T(1,128)}', space=vmem, size = 0x9000, scoped, tag = 'internal scratch']
  #allocation2 [shape = 's32[1]{0}', space=sflag, size = 0x4, scoped, tag = 'scratch operand']
  #allocation3 [shape = 's32[]', space=sflag, size = 0x4, offset = 0, fixed_abs, tag = 'sflag constant byte address 0x0 - dummy sync flag']
  #allocation4 [shape = 'u32[0]{0}', space=smem, size = 0, offset = 0, fixed_abs, tag = 'smem constant byte address 0x0 - null']
  %s0 = inlined_call_operand.hbm [shape: f32[8,16,16], index: 0, kind: input, shape index: {}]
  %s1 = inlined_call_operand.hbm [shape: f32[8,16,16], index: 1, kind: output, shape index: {}]
  %s2 = sld [smem:[#allocation0]]
  $region2: #{tpu_custom_call.1} parent=0
    _
  %s4 = ssub.s32 1, %s2
  %s5 = scalar_select 0, %s4, %s2
  %s7 = sshll.u32 1, 14
  %s8 = sxor.u32 4294967295, %s7
  %s10 = sshll.u32 %s0, 4
  %s11 = int_to_ptr.hbm [resolvable:$true] %s10
  %s12 = sshll.u32 %s1, 4
  %s13 = int_to_ptr.hbm [resolvable:$true] %s12
  %16 = dma.general %s11, 2048, %s13, [#allocation2], [#allocation3], [#allocation4], 0, 0
  %s17 = smul.u32 8, 16
  %s18 = smul.u32 %s17, 1
  %s19 = sshll.u32 %s18, 4
  %20 = dma.done [#allocation2], %s19
  %21 = vsyncmov [#allocation2]
  %s22 = vpop.sfrf %21
  %p23 = scmp.eq.s32.totalorder %s22, 0
  %p24 = pneg %p23
  %26 = shalt.err (%p24)

</llo_original>
